<compile_context>
chip_gen: v6e
topology: v6e:2x2x1
jax: 0.10.0
libtpu: 0.0.40
codegen_flags: <defaults>
</compile_context>

<pallas_src>
import jax
import jax.numpy as jnp
from jax.experimental import pallas as pl
from jax.experimental.pallas import tpu as pltpu

LN_EPS = 1e-5
LANE = 128
MiB = 1024 * 1024


def _round_up(x, m):
    return (x + m - 1) // m * m


def _cdiv(a, b):
    return -(-a // b)


# ---------------------------------------------------------------------------
# Generation-aware VMEM policy (v5e/v6e: 128 MiB per TC, v7x: 64 MiB per TC)
# ---------------------------------------------------------------------------
def _vmem_capacity_bytes():
    try:
        cap = getattr(pltpu.get_tpu_info(), "vmem_capacity_bytes", None)
        if cap:
            return int(cap)
    except Exception:
        pass
    return 64 * MiB  # conservative default (v7x per-core)


_VMEM_CAP = _vmem_capacity_bytes()
# Budget for resident weights + tiles (~96 MiB on 128-MiB parts, ~40 MiB on v7x).
_VMEM_BUDGET = max(24 * MiB, min(_VMEM_CAP - 24 * MiB, int(_VMEM_CAP * 0.75)))
# Scoped-vmem cap handed to Mosaic: always leave >= 12 MiB internal headroom.
_VMEM_LIMIT_CAP = max(32 * MiB, min(_VMEM_CAP - 12 * MiB, int(_VMEM_CAP * 0.82)))


# ---------------------------------------------------------------------------
# Probe pl.Buffered(1) support once, eagerly, at import.  (A try/except around
# a traced pallas_call is unreliable -- Mosaic errors surface at compile time.)
# ---------------------------------------------------------------------------
def _probe_single_buffer():
    try:
        def k(x_ref, o_ref):
            o_ref[...] = x_ref[...] + 1.0

        out = pl.pallas_call(
            k,
            out_shape=jax.ShapeDtypeStruct((8, 128), jnp.float32),
            grid=(1,),
            in_specs=[pl.BlockSpec((8, 128), lambda i: (0, 0),
                                   pipeline_mode=pl.Buffered(1))],
            out_specs=pl.BlockSpec((8, 128), lambda i: (0, 0)),
        )(jnp.zeros((8, 128), jnp.float32))
        jax.block_until_ready(out)
        return True
    except Exception:
        return False


_SINGLE_BUFFER_OK = _probe_single_buffer()


def _const_spec(shape, single):
    """Whole-array block with a constant index map (stationary weights)."""
    nd = len(shape)
    idx = lambda *_: (0,) * nd
    if single and nd == 2:
        return pl.BlockSpec(shape, idx, pipeline_mode=pl.Buffered(1))
    return pl.BlockSpec(shape, idx)


def _row_align(dtype):
    # bf16 vregs pack 16 rows per sublane tile; f32 packs 8.
    return 16 if jnp.dtype(dtype).itemsize < 4 else 8


# ===========================================================================
# ResidualBlock: one-time weight preparation + fused Pallas kernel
# ===========================================================================
def prepare_rb(params, *, compute_dtype=jnp.bfloat16, force_k_chunks=None):
    """One-time lane-dense padding + [W1|Wr] fusion of a ResidualBlock's
    weights (hoisted out of the per-call hot path)."""
    cdt = jnp.dtype(compute_dtype)
    itemsize = cdt.itemsize
    in_dim, hidden = params['w1'].shape
    out_dim = params['w2'].shape[1]
    IN_P = _round_up(in_dim, LANE)
    HID_P = _round_up(hidden, LANE)
    OUT_P = _round_up(out_dim, LANE)
    HO = HID_P + OUT_P

    # K-chunking of [W1 | Wr] so huge in_dims never need full VMEM residency
    # (matters for v7x's 64 MiB with big first-encoder inputs).
    wbuf = 1 if _SINGLE_BUFFER_OK else 2
    w_budget = _VMEM_BUDGET // 2
    fixed = HID_P * OUT_P * itemsize * wbuf + 8 * (HO + OUT_P) * 4
    avail = max(w_budget - fixed, 2 * LANE * HO * itemsize)
    if force_k_chunks is not None and force_k_chunks > 1:
        tk = max(LANE, _round_up(_cdiv(IN_P, force_k_chunks), LANE))
        nk = _cdiv(IN_P, tk)
    elif IN_P * HO * itemsize * wbuf <= avail:
        tk, nk = IN_P, 1
    else:
        tk = max(LANE, (avail // (2 * HO * itemsize)) // LANE * LANE)
        nk = _cdiv(IN_P, tk)
    IN_PP = tk * nk

    w1r = jnp.zeros((IN_PP, HO), cdt)
    w1r = w1r.at[:in_dim, :hidden].set(params['w1'].astype(cdt))
    w1r = w1r.at[:in_dim, HID_P:HID_P + out_dim].set(params['wr'].astype(cdt))
    b1r = jnp.zeros((1, HO), jnp.float32)
    b1r = b1r.at[:, :hidden].set(params['b1'].reshape(1, -1))
    b1r = b1r.at[:, HID_P:HID_P + out_dim].set(params['br'].reshape(1, -1))
    w2 = jnp.zeros((HID_P, OUT_P), cdt).at[:hidden, :out_dim].set(
        params['w2'].astype(cdt))
    b2 = jnp.zeros((1, OUT_P), jnp.float32).at[:, :out_dim].set(
        params['b2'].reshape(1, -1))
    gamma = jnp.zeros((1, OUT_P), jnp.float32).at[:, :out_dim].set(
        params['gamma'].reshape(1, -1))
    beta = jnp.zeros((1, OUT_P), jnp.float32).at[:, :out_dim].set(
        params['beta'].reshape(1, -1))
    mask = (jnp.arange(OUT_P) < out_dim).astype(jnp.float32).reshape(1, OUT_P)
    return dict(w1r=w1r, b1r=b1r, w2=w2, b2=b2, gamma=gamma, beta=beta,
                mask=mask, in_dim=in_dim, hidden=hidden, out_dim=out_dim,
                IN_P=IN_PP, HID_P=HID_P, OUT_P=OUT_P, HO=HO, tk=tk, nk=nk,
                dtype=cdt)


def _choose_rb_tile(prep, B, tb):
    cdt = prep['dtype']
    itemsize = cdt.itemsize
    ra = _row_align(cdt)
    wbuf = 1 if _SINGLE_BUFFER_OK else 2
    tk, nk, HO, HID_P, OUT_P = (prep['tk'], prep['nk'], prep['HO'],
                                prep['HID_P'], prep['OUT_P'])
    resident_w = (tk * HO * itemsize * (wbuf if nk == 1 else 2)
                  + HID_P * OUT_P * itemsize * wbuf
                  + (HO + 5 * OUT_P) * 4 * wbuf)

    def est(t):
        tiles = 2 * t * tk * itemsize + 2 * t * OUT_P * itemsize + t * HO * 4
        temps = t * (HO + 2 * OUT_P) * 4
        return resident_w + tiles + temps

    # Largest tile that fits the budget.  (The old ">= 8 grid steps" shrink
    # heuristic is removed: it only helps 2-TC v7x and strictly hurts v5e/v6e.)
    tb_eff = min(_round_up(tb, ra), _round_up(max(B, 1), ra))
    while tb_eff > ra and est(tb_eff) > _VMEM_BUDGET:
        half = max(ra, _round_up(tb_eff // 2, ra))
        if half == tb_eff:
            break
        tb_eff = half
    return tb_eff


def _rb_call(xp, prep, *, tb):
    cdt = prep['dtype']
    itemsize = cdt.itemsize
    IN_P, HID_P, OUT_P, HO = prep['IN_P'], prep['HID_P'], prep['OUT_P'], prep['HO']
    tk, nk = prep['tk'], prep['nk']
    out_dim = prep['out_dim']
    B_P = xp.shape[0]
    single = _SINGLE_BUFFER_OK
    wbuf = 1 if single else 2
    hid_p = HID_P
    inv_n = 1.0 / out_dim

    def kernel(x_ref, w1r_ref, b1r_ref, w2_ref, b2_ref, g_ref, bt_ref, m_ref,
               o_ref, acc_ref):
        k = pl.program_id(1)

        @pl.when(k == 0)
        def _():
            acc_ref[...] = jnp.zeros_like(acc_ref)

        # K-chunked fused matmul:  acc += x_chunk @ [W1 | Wr]_chunk
        acc_ref[...] += jnp.dot(x_ref[...], w1r_ref[...],
                                preferred_element_type=jnp.float32)

        @pl.when(k == pl.num_programs(1) - 1)
        def _():
            xw = acc_ref[...] + b1r_ref[...]
            h = jnp.maximum(xw[:, :hid_p], 0.0)      # relu(linear_1(x)), f32
            res = xw[:, hid_p:]                      # linear_res(x),     f32
            # Eval-mode dropout == identity.
            # TODO(synk): training-mode dropout via pltpu.prng_seed/prng_random_bits.
            h2 = jnp.dot(h.astype(w2_ref.dtype), w2_ref[...],
                         preferred_element_type=jnp.float32) + b2_ref[...]
            y = h2 + res
            # LayerNorm over the real feature width.  Padded columns of y are
            # exactly 0 (padded weight/bias columns are zero), so the mean
            # needs no mask; only the centered term feeding var does.
            mean = jnp.sum(y, axis=-1, keepdims=True) * inv_n
            d = y - mean
            var = jnp.sum(d * d * m_ref[...], axis=-1, keepdims=True) * inv_n
            o_ref[...] = (d * jax.lax.rsqrt(var + LN_EPS) * g_ref[...]
                          + bt_ref[...]).astype(o_ref.dtype)

    if nk == 1:
        w1r_spec = _const_spec((IN_P, HO), single)
    else:
        w1r_spec = pl.BlockSpec((tk, HO), lambda i, k: (k, 0))

    resident_w = (tk * HO * itemsize * (wbuf if nk == 1 else 2)
                  + HID_P * OUT_P * itemsize * wbuf
                  + (HO + 5 * OUT_P) * 4 * wbuf)
    est = (resident_w + 2 * tb * tk * itemsize + 2 * tb * OUT_P * itemsize
           + tb * HO * 4 + tb * (HO + 2 * OUT_P) * 4)
    vmem_limit = max(32 * MiB, min(est * 3 // 2 + 2 * MiB, _VMEM_LIMIT_CAP))

    flops = 2 * B_P * (IN_P * HO + HID_P * OUT_P)
    bytes_accessed = (xp.size * itemsize + B_P * OUT_P * itemsize
                      + (IN_P * HO + HID_P * OUT_P) * itemsize + 6 * OUT_P * 4)

    return pl.pallas_call(
        kernel,
        out_shape=jax.ShapeDtypeStruct((B_P, OUT_P), cdt),
        grid_spec=pltpu.PrefetchScalarGridSpec(
            num_scalar_prefetch=0,
            grid=(B_P // tb, nk),
            in_specs=[
                pl.BlockSpec((tb, tk), lambda i, k: (i, k)),   # x tile
                w1r_spec,                                      # [W1 | Wr]
                _const_spec((1, HO), single),                  # [b1 | br]
                _const_spec((HID_P, OUT_P), single),           # W2
                _const_spec((1, OUT_P), single),               # b2
                _const_spec((1, OUT_P), single),               # LN gamma
                _const_spec((1, OUT_P), single),               # LN beta
                _const_spec((1, OUT_P), single),               # LN column mask
            ],
            out_specs=pl.BlockSpec((tb, OUT_P), lambda i, k: (i, 0)),
            scratch_shapes=[pltpu.VMEM((tb, HO), jnp.float32)],
        ),
        compiler_params=pltpu.CompilerParams(
            dimension_semantics=("parallel", "arbitrary"),
            vmem_limit_bytes=int(vmem_limit)),
        cost_estimate=pl.CostEstimate(flops=int(flops), transcendentals=0,
                                      bytes_accessed=int(bytes_accessed)),
    )(xp, prep['w1r'], prep['b1r'], prep['w2'], prep['b2'],
      prep['gamma'], prep['beta'], prep['mask'])


def rb_apply(x, prep, *, tb=256, x_is_padded=False, valid_rows=None,
             return_padded=False):
    """Apply a prepared ResidualBlock to a 2-D input.

    x may be logical (B, in_dim) or already lane/row padded (x_is_padded=True,
    valid_rows = logical B); return_padded keeps the output lane-padded for
    chaining into the next layer (no HBM unpad/repad)."""
    cdt = prep['dtype']
    IN_P, out_dim, in_dim = prep['IN_P'], prep['out_dim'], prep['in_dim']
    if x_is_padded:
        B = int(valid_rows) if valid_rows is not None else x.shape[0]
    else:
        B = x.shape[0]
    tb_eff = _choose_rb_tile(prep, B, tb)
    B_P = _round_up(max(B, 1), tb_eff)
    if x_is_padded and x.shape[1] == IN_P:
        xr = x
        if xr.shape[0] > B_P:
            xr = xr[:B_P]
        elif xr.shape[0] < B_P:
            xr = jnp.zeros((B_P, IN_P), xr.dtype).at[:xr.shape[0]].set(xr)
        xp = xr.astype(cdt)
    else:
        xl = x[:B, :in_dim] if x_is_padded else x
        xp = jnp.zeros((B_P, IN_P), cdt).at[:B, :in_dim].set(xl.astype(cdt))
    out = _rb_call(xp, prep, tb=tb_eff)
    if return_padded:
        return out
    return out[:B, :out_dim]


# ===========================================================================
# Fused hidden->hidden layer stack (other_encoders + other_decoders)
# ===========================================================================
def prepare_stack(layer_params, *, compute_dtype=jnp.bfloat16):
    """Stack identical hidden->hidden ResidualBlocks so one pallas_call can run
    all of them with the activation kept in VMEM (no per-layer HBM round trip).
    Returns None if the stacked weights would not fit the VMEM budget."""
    if not layer_params:
        return None
    cdt = jnp.dtype(compute_dtype)
    hidden = layer_params[0]['w1'].shape[0]
    for lp in layer_params:
        if (lp['w1'].shape != (hidden, hidden) or lp['w2'].shape != (hidden, hidden)
                or lp['wr'].shape != (hidden, hidden)):
            return None
    D_P = _round_up(hidden, LANE)
    nl = len(layer_params)
    resident = nl * 3 * D_P * D_P * cdt.itemsize * 2   # conservative (2 bufs)
    if resident > (_VMEM_BUDGET * 3) // 5:
        # TODO(synk): stream stacked weights over a layer grid axis
        # (pl.Buffered(2)) instead of falling back to per-layer calls.
        return None

    sw1r = jnp.zeros((nl, D_P, 2 * D_P), cdt)
    sb1r = jnp.zeros((nl, 1, 2 * D_P), jnp.float32)
    sw2 = jnp.zeros((nl, D_P, D_P), cdt)
    sb2 = jnp.zeros((nl, 1, D_P), jnp.float32)
    sg = jnp.zeros((nl, 1, D_P), jnp.float32)
    sbt = jnp.zeros((nl, 1, D_P), jnp.float32)
    for l, lp in enumerate(layer_params):
        sw1r = sw1r.at[l, :hidden, :hidden].set(lp['w1'].astype(cdt))
        sw1r = sw1r.at[l, :hidden, D_P:D_P + hidden].set(lp['wr'].astype(cdt))
        sb1r = sb1r.at[l, :, :hidden].set(lp['b1'].reshape(1, -1))
        sb1r = sb1r.at[l, :, D_P:D_P + hidden].set(lp['br'].reshape(1, -1))
        sw2 = sw2.at[l, :hidden, :hidden].set(lp['w2'].astype(cdt))
        sb2 = sb2.at[l, :, :hidden].set(lp['b2'].reshape(1, -1))
        sg = sg.at[l, :, :hidden].set(lp['gamma'].reshape(1, -1))
        sbt = sbt.at[l, :, :hidden].set(lp['beta'].reshape(1, -1))
    mask = (jnp.arange(D_P) < hidden).astype(jnp.float32).reshape(1, D_P)
    return dict(w1r=sw1r, b1r=sb1r, w2=sw2, b2=sb2, gamma=sg, beta=sbt,
                mask=mask, hidden=hidden, D_P=D_P, nl=nl, dtype=cdt)


def _stack_call(xp, sprep, *, tb):
    nl, D_P, hidden = sprep['nl'], sprep['D_P'], sprep['hidden']
    cdt = sprep['dtype']
    itemsize = cdt.itemsize
    B_P = xp.shape[0]
    single = _SINGLE_BUFFER_OK
    inv_n = 1.0 / hidden

    def kernel(x_ref, w1r_ref, b1r_ref, w2_ref, b2_ref, g_ref, bt_ref, m_ref,
               o_ref):
        e = x_ref[...]
        m = m_ref[...]
        for l in range(nl):   # static unroll: all weights stay VMEM-resident
            xw = jnp.dot(e.astype(cdt), w1r_ref[l],
                         preferred_element_type=jnp.float32) + b1r_ref[l]
            h = jnp.maximum(xw[:, :D_P], 0.0)
            res = xw[:, D_P:]
            h2 = jnp.dot(h.astype(cdt), w2_ref[l],
                         preferred_element_type=jnp.float32) + b2_ref[l]
            y = h2 + res
            mean = jnp.sum(y, axis=-1, keepdims=True) * inv_n
            d = y - mean
            var = jnp.sum(d * d * m, axis=-1, keepdims=True) * inv_n
            e = d * jax.lax.rsqrt(var + LN_EPS) * g_ref[l] + bt_ref[l]
        o_ref[...] = e.astype(o_ref.dtype)

    est = (nl * 3 * D_P * D_P * itemsize * 2 + nl * 8 * D_P * 4 * 2
           + 4 * tb * D_P * itemsize + tb * 6 * D_P * 4)
    vmem_limit = max(32 * MiB, min(est * 3 // 2 + 2 * MiB, _VMEM_LIMIT_CAP))
    flops = 2 * B_P * nl * (D_P * 2 * D_P + D_P * D_P)
    bytes_accessed = (2 * B_P * D_P * itemsize
                      + nl * 3 * D_P * D_P * itemsize + nl * 8 * D_P * 4)

    return pl.pallas_call(
        kernel,
        out_shape=jax.ShapeDtypeStruct((B_P, D_P), cdt),
        grid_spec=pltpu.PrefetchScalarGridSpec(
            num_scalar_prefetch=0,
            grid=(B_P // tb,),
            in_specs=[
                pl.BlockSpec((tb, D_P), lambda i: (i, 0)),
                _const_spec((nl, D_P, 2 * D_P), single),
                _const_spec((nl, 1, 2 * D_P), single),
                _const_spec((nl, D_P, D_P), single),
                _const_spec((nl, 1, D_P), single),
                _const_spec((nl, 1, D_P), single),
                _const_spec((nl, 1, D_P), single),
                _const_spec((1, D_P), single),
            ],
            out_specs=pl.BlockSpec((tb, D_P), lambda i: (i, 0)),
        ),
        compiler_params=pltpu.CompilerParams(
            dimension_semantics=("parallel",),
            vmem_limit_bytes=int(vmem_limit)),
        cost_estimate=pl.CostEstimate(flops=int(flops), transcendentals=0,
                                      bytes_accessed=int(bytes_accessed)),
    )(xp, sprep['w1r'], sprep['b1r'], sprep['w2'], sprep['b2'],
      sprep['gamma'], sprep['beta'], sprep['mask'])


def stack_apply(x, sprep, *, tb=256, x_is_padded=False, valid_rows=None,
                return_padded=False):
    cdt = sprep['dtype']
    D_P, hidden = sprep['D_P'], sprep['hidden']
    itemsize = cdt.itemsize
    ra = _row_align(cdt)
    if x_is_padded:
        B = int(valid_rows) if valid_rows is not None else x.shape[0]
    else:
        B = x.shape[0]
    resident = sprep['nl'] * 3 * D_P * D_P * itemsize * 2

    def est(t):
        return resident + 4 * t * D_P * itemsize + t * 6 * D_P * 4

    tb_eff = min(_round_up(tb, ra), _round_up(max(B, 1), ra))
    while tb_eff > ra and est(tb_eff) > _VMEM_BUDGET:
        half = max(ra, _round_up(tb_eff // 2, ra))
        if half == tb_eff:
            break
        tb_eff = half
    B_P = _round_up(max(B, 1), tb_eff)
    if x_is_padded and x.shape[1] == D_P:
        xr = x
        if xr.shape[0] > B_P:
            xr = xr[:B_P]
        elif xr.shape[0] < B_P:
            xr = jnp.zeros((B_P, D_P), xr.dtype).at[:xr.shape[0]].set(xr)
        xp = xr.astype(cdt)
    else:
        xl = x[:B, :hidden] if x_is_padded else x
        xp = jnp.zeros((B_P, D_P), cdt).at[:B, :hidden].set(xl.astype(cdt))
    out = _stack_call(xp, sprep, tb=tb_eff)
    if return_padded:
        return out
    return out[:B, :hidden]


# ===========================================================================
# Small Pallas linear kernel (the global residual nn.Linear(L, H))
# ===========================================================================
def prepare_linear(w, b, *, compute_dtype=jnp.bfloat16):
    cdt = jnp.dtype(compute_dtype)
    in_dim, out_dim = w.shape
    IN_P, OUT_P = _round_up(in_dim, LANE), _round_up(out_dim, LANE)
    wp = jnp.zeros((IN_P, OUT_P), cdt).at[:in_dim, :out_dim].set(w.astype(cdt))
    bp = jnp.zeros((1, OUT_P), jnp.float32).at[:, :out_dim].set(b.reshape(1, -1))
    return dict(w=wp, b=bp, in_dim=in_dim, out_dim=out_dim,
                IN_P=IN_P, OUT_P=OUT_P, dtype=cdt)


def _linear_kernel(x_ref, w_ref, b_ref, o_ref):
    o_ref[...] = (jnp.dot(x_ref[...], w_ref[...],
                          preferred_element_type=jnp.float32)
                  + b_ref[...]).astype(o_ref.dtype)


def linear_apply(x, lprep, *, tb=256):
    # TODO(synk): fold this into the temporal-decoder epilogue to remove one
    # launch + the separate residual-add HBM read.
    cdt = lprep['dtype']
    itemsize = cdt.itemsize
    B = x.shape[0]
    IN_P, OUT_P = lprep['IN_P'], lprep['OUT_P']
    ra = _row_align(cdt)
    tb_eff = min(_round_up(tb, ra), _round_up(max(B, 1), ra))
    B_P = _round_up(max(B, 1), tb_eff)
    xp = jnp.zeros((B_P, IN_P), cdt).at[:B, :lprep['in_dim']].set(x.astype(cdt))
    wbuf = 1 if _SINGLE_BUFFER_OK else 2
    est = (IN_P * OUT_P * itemsize * wbuf + OUT_P * 4 * wbuf
           + 2 * tb_eff * (IN_P * itemsize + OUT_P * 4))
    vmem_limit = max(32 * MiB, min(est * 3 // 2 + 2 * MiB, _VMEM_LIMIT_CAP))
    out = pl.pallas_call(
        _linear_kernel,
        out_shape=jax.ShapeDtypeStruct((B_P, OUT_P), jnp.float32),
        grid_spec=pltpu.PrefetchScalarGridSpec(
            num_scalar_prefetch=0,
            grid=(B_P // tb_eff,),
            in_specs=[pl.BlockSpec((tb_eff, IN_P), lambda i: (i, 0)),
                      _const_spec((IN_P, OUT_P), _SINGLE_BUFFER_OK),
                      _const_spec((1, OUT_P), _SINGLE_BUFFER_OK)],
            out_specs=pl.BlockSpec((tb_eff, OUT_P), lambda i: (i, 0)),
        ),
        compiler_params=pltpu.CompilerParams(
            dimension_semantics=("parallel",),
            vmem_limit_bytes=int(vmem_limit)),
    )(xp, lprep['w'], lprep['b'])
    return out[:B, :lprep['out_dim']]


# ===========================================================================
# Parameter construction (PyTorch-style default init, deterministic)
# ===========================================================================
def init_linear(key, in_dim, out_dim):
    kw, kb = jax.random.split(key)
    bound = 1.0 / jnp.sqrt(in_dim)
    w_t = jax.random.uniform(kw, (in_dim, out_dim), jnp.float32, -bound, bound)
    b = jax.random.uniform(kb, (1, out_dim), jnp.float32, -bound, bound)
    return w_t, b


def make_rb_params(key, in_dim, hidden_dim, out_dim):
    k1, k2, k3 = jax.random.split(key, 3)
    w1, b1 = init_linear(k1, in_dim, hidden_dim)
    w2, b2 = init_linear(k2, hidden_dim, out_dim)
    wr, br = init_linear(k3, in_dim, out_dim)
    return dict(w1=w1, b1=b1, w2=w2, b2=b2, wr=wr, br=br,
                gamma=jnp.ones((1, out_dim), jnp.float32),
                beta=jnp.zeros((1, out_dim), jnp.float32))


def make_tide_params(key, L, H, r, r_hat, p, hidden, enc_layers, dec_layers,
                     fp_hidden, td_hidden):
    ks = jax.random.split(key, 7)
    enc_keys = jax.random.split(ks[2], max(enc_layers - 1, 1))
    dec_keys = jax.random.split(ks[3], max(dec_layers - 1, 1))
    return {
        'feature_projection': make_rb_params(ks[0], r, fp_hidden, r_hat),
        'first_encoder': make_rb_params(ks[1], L + 1 + (L + H) * r_hat,
                                        hidden, hidden),
        'other_encoders': [make_rb_params(enc_keys[i], hidden, hidden, hidden)
                           for i in range(enc_layers - 1)],
        'other_decoders': [make_rb_params(dec_keys[i], hidden, hidden, hidden)
                           for i in range(dec_layers - 1)],
        'last_decoder': make_rb_params(ks[4], hidden, hidden, p * H),
        'temporal_decoder': make_rb_params(ks[5], p + r_hat, td_hidden, 1),
        'residual': init_linear(ks[6], L, H),
    }


def prepare_tide(params, *, compute_dtype=jnp.bfloat16, fuse_mid_stack=True):
    """One-time weight preparation for the full TiDE model."""
    cdt = jnp.dtype(compute_dtype)
    prep = {'compute_dtype': cdt}
    prep['feature_projection'] = prepare_rb(params['feature_projection'],
                                            compute_dtype=cdt)
    prep['first_encoder'] = prepare_rb(params['first_encoder'],
                                       compute_dtype=cdt)
    mid = list(params['other_encoders']) + list(params['other_decoders'])
    stack = prepare_stack(mid, compute_dtype=cdt) if (fuse_mid_stack and mid) \
        else None
    prep['mid_stack'] = stack
    prep['mid_layers'] = (None if stack is not None
                          else [prepare_rb(lp, compute_dtype=cdt) for lp in mid])
    prep['last_decoder'] = prepare_rb(params['last_decoder'], compute_dtype=cdt)
    prep['temporal_decoder'] = prepare_rb(params['temporal_decoder'],
                                          compute_dtype=cdt)
    wres, bres = params['residual']
    prep['residual'] = prepare_linear(wres, bres, compute_dtype=cdt)
    return prep


# ===========================================================================
# TiDE forward (Pallas path): activations stay lane-padded between layers
# ===========================================================================
def tide_forward_pallas(prep, x, covariates, attributes, *, H, p):
    b, L, n = x.shape
    r = covariates.shape[-1]
    BN = b * n
    x2 = jnp.transpose(x, (0, 2, 1)).reshape(BN, L)            # 'b l n -> (b n) l'
    cov = jnp.transpose(covariates, (0, 2, 1, 3)).reshape(
        BN, covariates.shape[1], r)                            # 'b l n r -> (b n) l r'
    attr = attributes.reshape(BN, 1)                           # 'b n 1 -> (b n) 1'

    # ---- Encoder ----
    fp = prep['feature_projection']
    r_hat = fp['out_dim']
    covp = rb_apply(cov.reshape(-1, r), fp).reshape(BN, L + H, r_hat)
    cov_future = covp[:, -H:, :]
    cov_flat = covp.reshape(BN, (L + H) * r_hat)               # 'b l r -> b (l r)'
    e_in = jnp.concatenate([x2.astype(cov_flat.dtype),
                            attr.astype(cov_flat.dtype), cov_flat], axis=1)
    # first encoder output stays lane-padded for chaining
    e_pad = rb_apply(e_in, prep['first_encoder'], return_padded=True)

    # ---- fused hidden->hidden encoder + decoder stack ----
    if prep['mid_stack'] is not None:
        e_pad = stack_apply(e_pad, prep['mid_stack'], x_is_padded=True,
                            valid_rows=BN, return_padded=True)
    else:
        for lp in prep['mid_layers']:
            e_pad = rb_apply(e_pad, lp, x_is_padded=True, valid_rows=BN,
                             return_padded=True)

    # ---- Decoder tail ----
    g = rb_apply(e_pad, prep['last_decoder'], x_is_padded=True, valid_rows=BN)
    matrixD = g.reshape(BN, H, p)                              # 'b (h p) -> b h p'
    td_in = jnp.concatenate([matrixD, cov_future.astype(matrixD.dtype)], axis=-1)
    td = prep['temporal_decoder']
    td_out = rb_apply(td_in.reshape(BN * H, p + r_hat), td)[:, 0].reshape(BN, H)

    # ---- global residual + output rearrange ----
    pred = td_out.astype(jnp.float32) + linear_apply(x2, prep['residual'])
    return pred.reshape(b, n, H).transpose(0, 2, 1)            # '(b n) h -> b h n'


# ===========================================================================
# Pure-JAX reference (mirrors the PyTorch module exactly)
# ===========================================================================
def residual_block_ref(x, p):
    h = jnp.maximum(x @ p['w1'] + p['b1'], 0.0)
    h = h @ p['w2'] + p['b2']
    y = h + x @ p['wr'] + p['br']
    mean = jnp.mean(y, axis=-1, keepdims=True)
    var = jnp.mean((y - mean) ** 2, axis=-1, keepdims=True)
    return (y - mean) / jnp.sqrt(var + LN_EPS) * p['gamma'] + p['beta']


def tide_forward_ref(params, x, covariates, attributes, *, H, p):
    b, L, n = x.shape
    r = covariates.shape[-1]
    x2 = jnp.transpose(x, (0, 2, 1)).reshape(b * n, L)
    cov = jnp.transpose(covariates, (0, 2, 1, 3)).reshape(b * n, L + H, r)
    attr = attributes.reshape(b * n, 1)
    covp = residual_block_ref(cov, params['feature_projection'])
    cov_future = covp[:, -H:, :]
    cov_flat = covp.reshape(b * n, -1)
    e = jnp.concatenate([x2, attr, cov_flat], axis=1)
    e = residual_block_ref(e, params['first_encoder'])
    for lp in params['other_encoders']:
        e = residual_block_ref(e, lp)
    for lp in params['other_decoders']:
        e = residual_block_ref(e, lp)
    g = residual_block_ref(e, params['last_decoder'])
    matrixD = g.reshape(b * n, H, p)
    td_in = jnp.concatenate([matrixD, cov_future], axis=-1)
    td_out = residual_block_ref(td_in, params['temporal_decoder'])[..., 0]
    wres, bres = params['residual']
    pred = td_out + (x2 @ wres + bres)
    return pred.reshape(b, n, H).transpose(0, 2, 1)


# ===========================================================================
if __name__ == "__main__":
    # Small-but-representative TiDE config.
    B, N = 2, 3               # batch, number of series
    L, H = 8, 4               # lookback, horizon
    r, r_hat, p = 3, 4, 2
    hidden_dim = 16
    enc_layers, dec_layers = 2, 2
    fp_hidden, td_hidden = 8, 8

    key = jax.random.PRNGKey(0)
    kp, kx, kc, ka, kb = jax.random.split(key, 5)
    params = make_tide_params(kp, L, H, r, r_hat, p, hidden_dim,
                              enc_layers, dec_layers, fp_hidden, td_hidden)
    x = jax.random.normal(kx, (B, L, N), jnp.float32)
    covariates = jax.random.normal(kc, (B, L + H, N, r), jnp.float32)
    attributes = jax.random.normal(ka, (B, N, 1), jnp.float32)

    ref = tide_forward_ref(params, x, covariates, attributes, H=H, p=p)

    # f32 Pallas path: tight tolerance vs the JAX reference.
    prep32 = prepare_tide(params, compute_dtype=jnp.float32)
    pred32 = jax.block_until_ready(
        tide_forward_pallas(prep32, x, covariates, attributes, H=H, p=p))
    assert pred32.shape == (B, H, N)
    assert jnp.allclose(pred32, ref, atol=2e-3, rtol=2e-3), \
        "TiDE (f32) mismatch vs JAX reference"

    # bf16-operand Pallas path (default): loose tolerance, finite output.
    prep16 = prepare_tide(params)      # compute_dtype defaults to bfloat16
    pred16 = jax.block_until_ready(
        tide_forward_pallas(prep16, x, covariates, attributes, H=H, p=p))
    assert pred16.shape == (B, H, N)
    assert bool(jnp.all(jnp.isfinite(pred16)))
    assert float(jnp.max(jnp.abs(pred16 - ref))) < 0.5, \
        "TiDE (bf16 operands) drifted too far from the f32 reference"

    # Standalone ResidualBlock checks: non-128-multiple dims, non-tile batch,
    # forced K-split reduction path, and bf16 operands.
    rb_p = make_rb_params(kb, 300, 96, 48)
    xb = jax.random.normal(kb, (40, 300), jnp.float32)
    ref_rb = residual_block_ref(xb, rb_p)

    prep_rb32 = prepare_rb(rb_p, compute_dtype=jnp.float32)
    out32 = jax.block_until_ready(rb_apply(xb, prep_rb32))
    assert jnp.allclose(out32, ref_rb, atol=1e-3, rtol=1e-3), \
        "ResidualBlock (f32) mismatch vs JAX reference"

    prep_rb_k = prepare_rb(rb_p, compute_dtype=jnp.float32, force_k_chunks=3)
    assert prep_rb_k['nk'] > 1
    outk = jax.block_until_ready(rb_apply(xb, prep_rb_k))
    assert jnp.allclose(outk, ref_rb, atol=1e-3, rtol=1e-3), \
        "ResidualBlock (K-split) mismatch vs JAX reference"

    prep_rb16 = prepare_rb(rb_p, compute_dtype=jnp.bfloat16)
    out16 = jax.block_until_ready(rb_apply(xb, prep_rb16))
    assert float(jnp.max(jnp.abs(out16 - ref_rb))) < 0.3, \
        "ResidualBlock (bf16 operands) drifted too far from f32 reference"

    print("KERNEL_OK")
</pallas_src>

<mosaic_0001>
module attributes {stable_mosaic.version = 11 : i64} {
  func.func @k(%arg0: i32, %arg1: memref<8x128xf32, #tpu.memory_space<vmem>>, %arg2: memref<8x128xf32, #tpu.memory_space<vmem>>) attributes {dimension_semantics = [#tpu.dimension_semantics<arbitrary>], iteration_bounds = array<i64: 1>, scalar_prefetch = 0 : i64, scratch_operands = 0 : i64, tpu.core_type = #tpu.core_type<tc>, window_params = [{pipeline_mode = #tpu.pipeline_mode<synchronous>, transform_indices = @transform_0, window_bounds = array<i64: 8, 128>}, {pipeline_mode = #tpu.pipeline_mode<synchronous>, transform_indices = @transform_1, window_bounds = array<i64: 8, 128>}]} {
    %c0 = arith.constant 0 : index
    %c0_0 = arith.constant 0 : index
    %0 = vector.load %arg1[%c0, %c0_0] : memref<8x128xf32, #tpu.memory_space<vmem>>, vector<8x128xf32>
    %cst = arith.constant 1.000000e+00 : f32
    %1 = vector.broadcast %cst : f32 to vector<8x128xf32>
    %2 = arith.addf %0, %1 : vector<8x128xf32>
    %c0_1 = arith.constant 0 : index
    %c0_2 = arith.constant 0 : index
    %3 = vector.load %arg2[%c0_1, %c0_2] : memref<8x128xf32, #tpu.memory_space<vmem>>, vector<8x128xf32>
    tpu.vector_store %arg2[%c0_1, %c0_2], %2 {strides = array<i32>} : memref<8x128xf32, #tpu.memory_space<vmem>>, vector<8x128xf32>,
    return
  }
  func.func @transform_0(%arg0: i32) -> (i32, i32) {
    %c0_i32 = arith.constant 0 : i32
    %c0_i32_0 = arith.constant 0 : i32
    %c0_i32_1 = arith.constant 0 : i32
    return %c0_i32, %c0_i32_0 : i32, i32
  }
  func.func @transform_1(%arg0: i32) -> (i32, i32) {
    %c0_i32 = arith.constant 0 : i32
    %c0_i32_0 = arith.constant 0 : i32
    %c0_i32_1 = arith.constant 0 : i32
    return %c0_i32, %c0_i32_0 : i32, i32
  }
}

module attributes {stable_mosaic.version = 11 : i64} {
  func.func @kernel(%arg0: i32, %arg1: i32, %arg2: memref<72x128xf32, #tpu.memory_space<vmem>>, %arg3: memref<128x256xf32, #tpu.memory_space<vmem>>, %arg4: memref<1x256xf32, #tpu.memory_space<vmem>>, %arg5: memref<128x128xf32, #tpu.memory_space<vmem>>, %arg6: memref<1x128xf32, #tpu.memory_space<vmem>>, %arg7: memref<1x128xf32, #tpu.memory_space<vmem>>, %arg8: memref<1x128xf32, #tpu.memory_space<vmem>>, %arg9: memref<1x128xf32, #tpu.memory_space<vmem>>, %arg10: memref<72x128xf32, #tpu.memory_space<vmem>>, %arg11: memref<72x256xf32, #tpu.memory_space<vmem>>) attributes {dimension_semantics = [#tpu.dimension_semantics<parallel>, #tpu.dimension_semantics<arbitrary>], iteration_bounds = array<i64: 1, 1>, scalar_prefetch = 0 : i64, scratch_operands = 1 : i64, tpu.core_type = #tpu.core_type<tc>, window_params = [{transform_indices = @transform_0, window_bounds = array<i64: 72, 128>}, {pipeline_mode = #tpu.pipeline_mode<synchronous>, transform_indices = @transform_1, window_bounds = array<i64: 128, 256>}, {pipeline_mode = #tpu.pipeline_mode<synchronous>, transform_indices = @transform_2, window_bounds = array<i64: 1, 256>}, {pipeline_mode = #tpu.pipeline_mode<synchronous>, transform_indices = @transform_3, window_bounds = array<i64: 128, 128>}, {pipeline_mode = #tpu.pipeline_mode<synchronous>, transform_indices = @transform_4, window_bounds = array<i64: 1, 128>}, {pipeline_mode = #tpu.pipeline_mode<synchronous>, transform_indices = @transform_5, window_bounds = array<i64: 1, 128>}, {pipeline_mode = #tpu.pipeline_mode<synchronous>, transform_indices = @transform_6, window_bounds = array<i64: 1, 128>}, {pipeline_mode = #tpu.pipeline_mode<synchronous>, transform_indices = @transform_7, window_bounds = array<i64: 1, 128>}, {transform_indices = @transform_8, window_bounds = array<i64: 72, 128>}]} {
    %c0_i32 = arith.constant 0 : i32
    %0 = arith.cmpi eq, %arg1, %c0_i32 : i32
    %1 = arith.extui %0 : i1 to i32
    %c0_i32_0 = arith.constant 0 : i32
    %2 = arith.cmpi ne, %1, %c0_i32_0 : i32
    scf.if %2 {
      %cst_10 = arith.constant 0.000000e+00 : f32
      %12 = vector.broadcast %cst_10 : f32 to vector<72x256xf32>
      %c0_11 = arith.constant 0 : index
      %c0_12 = arith.constant 0 : index
      %13 = vector.load %arg11[%c0_11, %c0_12] : memref<72x256xf32, #tpu.memory_space<vmem>>, vector<72x256xf32>
      tpu.vector_store %arg11[%c0_11, %c0_12], %12 {strides = array<i32>} : memref<72x256xf32, #tpu.memory_space<vmem>>, vector<72x256xf32>,
    } else {
    }
    %c0 = arith.constant 0 : index
    %c0_1 = arith.constant 0 : index
    %3 = vector.load %arg11[%c0, %c0_1] : memref<72x256xf32, #tpu.memory_space<vmem>>, vector<72x256xf32>
    %c0_2 = arith.constant 0 : index
    %c0_3 = arith.constant 0 : index
    %4 = vector.load %arg2[%c0_2, %c0_3] : memref<72x128xf32, #tpu.memory_space<vmem>>, vector<72x128xf32>
    %c0_4 = arith.constant 0 : index
    %c0_5 = arith.constant 0 : index
    %5 = vector.load %arg3[%c0_4, %c0_5] : memref<128x256xf32, #tpu.memory_space<vmem>>, vector<128x256xf32>
    %cst = arith.constant dense<0.000000e+00> : vector<72x256xf32>
    %6 = tpu.matmul %4, %5, %cst {dimension_numbers = #tpu.dot_dimension_numbers<[1], [0], [0], [1], [0, 0, 1, 1], [], []>} : vector<72x128xf32>, vector<128x256xf32>, vector<72x256xf32> -> vector<72x256xf32>
    %7 = arith.addf %3, %6 : vector<72x256xf32>
    %c0_6 = arith.constant 0 : index
    %c0_7 = arith.constant 0 : index
    %8 = vector.load %arg11[%c0_6, %c0_7] : memref<72x256xf32, #tpu.memory_space<vmem>>, vector<72x256xf32>
    tpu.vector_store %arg11[%c0_6, %c0_7], %7 {strides = array<i32>} : memref<72x256xf32, #tpu.memory_space<vmem>>, vector<72x256xf32>,
    %c0_i32_8 = arith.constant 0 : i32
    %9 = arith.cmpi eq, %arg1, %c0_i32_8 : i32
    %10 = arith.extui %9 : i1 to i32
    %c0_i32_9 = arith.constant 0 : i32
    %11 = arith.cmpi ne, %10, %c0_i32_9 : i32
    scf.if %11 {
      %c0_10 = arith.constant 0 : index
      %c0_11 = arith.constant 0 : index
      %12 = vector.load %arg11[%c0_10, %c0_11] : memref<72x256xf32, #tpu.memory_space<vmem>>, vector<72x256xf32>
      %c0_12 = arith.constant 0 : index
      %c0_13 = arith.constant 0 : index
      %13 = vector.load %arg4[%c0_12, %c0_13] : memref<1x256xf32, #tpu.memory_space<vmem>>, vector<1x256xf32>
      %14 = vector.broadcast %13 : vector<1x256xf32> to vector<72x256xf32>
      %15 = arith.addf %12, %14 : vector<72x256xf32>
      %16 = vector.extract_strided_slice %15 {offsets = [0, 0], sizes = [72, 128], strides = [1, 1]} : vector<72x256xf32> to vector<72x128xf32>
      %cst_14 = arith.constant 0.000000e+00 : f32
      %17 = vector.broadcast %cst_14 : f32 to vector<72x128xf32>
      %18 = arith.maximumf %16, %17 : vector<72x128xf32>
      %19 = vector.extract_strided_slice %15 {offsets = [0, 128], sizes = [72, 128], strides = [1, 1]} : vector<72x256xf32> to vector<72x128xf32>
      %c0_15 = arith.constant 0 : index
      %c0_16 = arith.constant 0 : index
      %20 = vector.load %arg5[%c0_15, %c0_16] : memref<128x128xf32, #tpu.memory_space<vmem>>, vector<128x128xf32>
      %cst_17 = arith.constant dense<0.000000e+00> : vector<72x128xf32>
      %21 = tpu.matmul %18, %20, %cst_17 {dimension_numbers = #tpu.dot_dimension_numbers<[1], [0], [0], [1], [0, 0, 1, 1], [], []>} : vector<72x128xf32>, vector<128x128xf32>, vector<72x128xf32> -> vector<72x128xf32>
      %c0_18 = arith.constant 0 : index
      %c0_19 = arith.constant 0 : index
      %22 = vector.load %arg6[%c0_18, %c0_19] : memref<1x128xf32, #tpu.memory_space<vmem>>, vector<1x128xf32>
      %23 = vector.broadcast %22 : vector<1x128xf32> to vector<72x128xf32>
      %24 = arith.addf %21, %23 : vector<72x128xf32>
      %25 = arith.addf %24, %19 : vector<72x128xf32>
      %cst_20 = arith.constant dense<0.000000e+00> : vector<72xf32>
      %26 = vector.multi_reduction <add>, %25, %cst_20 [1] : vector<72x128xf32> to vector<72xf32>
      %27 = vector.shape_cast %26 : vector<72xf32> to vector<72x1xf32>
      %cst_21 = arith.constant 2.500000e-01 : f32
      %28 = vector.broadcast %cst_21 : f32 to vector<72x1xf32>
      %29 = arith.mulf %27, %28 : vector<72x1xf32>
      %30 = vector.broadcast %29 : vector<72x1xf32> to vector<72x128xf32>
      %31 = arith.subf %25, %30 : vector<72x128xf32>
      %32 = arith.mulf %31, %31 : vector<72x128xf32>
      %c0_22 = arith.constant 0 : index
      %c0_23 = arith.constant 0 : index
      %33 = vector.load %arg9[%c0_22, %c0_23] : memref<1x128xf32, #tpu.memory_space<vmem>>, vector<1x128xf32>
      %34 = vector.broadcast %33 : vector<1x128xf32> to vector<72x128xf32>
      %35 = arith.mulf %32, %34 : vector<72x128xf32>
      %cst_24 = arith.constant dense<0.000000e+00> : vector<72xf32>
      %36 = vector.multi_reduction <add>, %35, %cst_24 [1] : vector<72x128xf32> to vector<72xf32>
      %37 = vector.shape_cast %36 : vector<72xf32> to vector<72x1xf32>
      %cst_25 = arith.constant 2.500000e-01 : f32
      %38 = vector.broadcast %cst_25 : f32 to vector<72x1xf32>
      %39 = arith.mulf %37, %38 : vector<72x1xf32>
      %cst_26 = arith.constant 9.99999974E-6 : f32
      %40 = vector.broadcast %cst_26 : f32 to vector<72x1xf32>
      %41 = arith.addf %39, %40 : vector<72x1xf32>
      %42 = math.rsqrt %41 : vector<72x1xf32>
      %43 = vector.broadcast %42 : vector<72x1xf32> to vector<72x128xf32>
      %44 = arith.mulf %31, %43 : vector<72x128xf32>
      %c0_27 = arith.constant 0 : index
      %c0_28 = arith.constant 0 : index
      %45 = vector.load %arg7[%c0_27, %c0_28] : memref<1x128xf32, #tpu.memory_space<vmem>>, vector<1x128xf32>
      %46 = vector.broadcast %45 : vector<1x128xf32> to vector<72x128xf32>
      %47 = arith.mulf %44, %46 : vector<72x128xf32>
      %c0_29 = arith.constant 0 : index
      %c0_30 = arith.constant 0 : index
      %48 = vector.load %arg8[%c0_29, %c0_30] : memref<1x128xf32, #tpu.memory_space<vmem>>, vector<1x128xf32>
      %49 = vector.broadcast %48 : vector<1x128xf32> to vector<72x128xf32>
      %50 = arith.addf %47, %49 : vector<72x128xf32>
      %c0_31 = arith.constant 0 : index
      %c0_32 = arith.constant 0 : index
      %51 = vector.load %arg10[%c0_31, %c0_32] : memref<72x128xf32, #tpu.memory_space<vmem>>, vector<72x128xf32>
      tpu.vector_store %arg10[%c0_31, %c0_32], %50 {strides = array<i32>} : memref<72x128xf32, #tpu.memory_space<vmem>>, vector<72x128xf32>,
    } else {
    }
    return
  }
  func.func @transform_0(%arg0: i32, %arg1: i32) -> (i32, i32) {
    %c0_i32 = arith.constant 0 : i32
    return %arg0, %arg1 : i32, i32
  }
  func.func @transform_1(%arg0: i32, %arg1: i32) -> (i32, i32) {
    %c0_i32 = arith.constant 0 : i32
    %c0_i32_0 = arith.constant 0 : i32
    %c0_i32_1 = arith.constant 0 : i32
    return %c0_i32, %c0_i32_0 : i32, i32
  }
  func.func @transform_2(%arg0: i32, %arg1: i32) -> (i32, i32) {
    %c0_i32 = arith.constant 0 : i32
    %c0_i32_0 = arith.constant 0 : i32
    %c0_i32_1 = arith.constant 0 : i32
    return %c0_i32, %c0_i32_0 : i32, i32
  }
  func.func @transform_3(%arg0: i32, %arg1: i32) -> (i32, i32) {
    %c0_i32 = arith.constant 0 : i32
    %c0_i32_0 = arith.constant 0 : i32
    %c0_i32_1 = arith.constant 0 : i32
    return %c0_i32, %c0_i32_0 : i32, i32
  }
  func.func @transform_4(%arg0: i32, %arg1: i32) -> (i32, i32) {
    %c0_i32 = arith.constant 0 : i32
    %c0_i32_0 = arith.constant 0 : i32
    %c0_i32_1 = arith.constant 0 : i32
    return %c0_i32, %c0_i32_0 : i32, i32
  }
  func.func @transform_5(%arg0: i32, %arg1: i32) -> (i32, i32) {
    %c0_i32 = arith.constant 0 : i32
    %c0_i32_0 = arith.constant 0 : i32
    %c0_i32_1 = arith.constant 0 : i32
    return %c0_i32, %c0_i32_0 : i32, i32
  }
  func.func @transform_6(%arg0: i32, %arg1: i32) -> (i32, i32) {
    %c0_i32 = arith.constant 0 : i32
    %c0_i32_0 = arith.constant 0 : i32
    %c0_i32_1 = arith.constant 0 : i32
    return %c0_i32, %c0_i32_0 : i32, i32
  }
  func.func @transform_7(%arg0: i32, %arg1: i32) -> (i32, i32) {
    %c0_i32 = arith.constant 0 : i32
    %c0_i32_0 = arith.constant 0 : i32
    %c0_i32_1 = arith.constant 0 : i32
    return %c0_i32, %c0_i32_0 : i32, i32
  }
  func.func @transform_8(%arg0: i32, %arg1: i32) -> (i32, i32) {
    %c0_i32 = arith.constant 0 : i32
    %c0_i32_0 = arith.constant 0 : i32
    return %arg0, %c0_i32 : i32, i32
  }
}

</mosaic_0001>

<llo_original>
// kernel: tpu_custom_call.1
$region0: #{tpu_custom_call.1}
  #allocation0 [shape = 'u32[]', space=smem, size = 0x4, offset = 0x4, fixed_abs, tag = 'smem constant byte address 0x4 - core index']
  #allocation1 [shape = 'u32[144,128]{1,0:T(1,128)}', space=vmem, size = 0x12000, scoped, tag = 'internal scratch']
  %s0 = inlined_call_operand.hbm [shape: f32[8,128], index: 0, kind: input, shape index: {}]
  %s1 = inlined_call_operand.hbm [shape: f32[8,128], index: 1, kind: output, shape index: {}]
  %s2 = sld [smem:[#allocation0]]
  $region18: #{tpu_custom_call.1} parent=0
    _
  %s4 = ssub.s32 1, %s2
  %s5 = scalar_select 0, %s4, %s2
  $region1: #{tpu_custom_call.1} parent=0
    #allocation2 [shape = 'u8[4096]{0}', space=vmem, size = 0x1000, scoped, tag = 'input window, operand 0, single buffered']
    #allocation3 [shape = 's32[1]{0}', space=sflag, size = 0x4, scoped, tag = 'scoped memory for tpu_custom_call.1']
    #allocation4 [shape = 's32[1]{0}', space=sflag, size = 0x4, scoped, tag = 'scoped memory for tpu_custom_call.1']
    #allocation5 [shape = 'u8[4096]{0}', space=vmem, size = 0x1000, scoped, tag = 'output window, operand 0, single buffered']
    %6 = vsyncpa [#allocation3], 0
    %7 = vsyncpa [#allocation4], 0
    // Predicated region
    $region2: #{tpu_custom_call.1} parent=1 // pred_check
      _
    $region3: #{tpu_custom_call.1} parent=1 // pred_check_branch
      %9 = sbr.rel (0) target = $region5
    $region4: #{tpu_custom_call.1} parent=1 // pred_region
      %s11 = ssub.s32 128, 128
      %12 = vsyncadd [#allocation3], %s11
      %s14 = sshll.u32 [#allocation2], 4
      %s15 = int_to_ptr.vmem [resolvable:$true] %s14
      %17 = dma.hbm_to_vmem [thread:$0]  %s0, 128, %s15, [#allocation3]
    $region5: #{tpu_custom_call.1} parent=1 // pred_fallthru
      _
    // Predicated region
    $region6: #{tpu_custom_call.1} parent=1 // pred_check
      _
    $region7: #{tpu_custom_call.1} parent=1 // pred_check_branch
      %19 = sbr.rel (0) target = $region9
    $region8: #{tpu_custom_call.1} parent=1 // pred_region
      %20 = dma.done [#allocation3], 128
    $region9: #{tpu_custom_call.1} parent=1 // pred_fallthru
      _
    %v21 = vld [vmem:[#allocation2] sm:$0xff]
    %v22 = vadd.f32 %v21, 1.0
    %23 = vst [vmem:[#allocation5] sm:$0xff] %v22
    // Predicated region
    $region10: #{tpu_custom_call.1} parent=1 // pred_check
      _
    $region11: #{tpu_custom_call.1} parent=1 // pred_check_branch
      %25 = sbr.rel (0) target = $region13
    $region12: #{tpu_custom_call.1} parent=1 // pred_region
      %s27 = ssub.s32 128, 128
      %28 = vsyncadd [#allocation4], %s27
      %s30 = sshll.u32 [#allocation5], 4
      %s31 = int_to_ptr.vmem [resolvable:$true] %s30
      %33 = dma.vmem_to_hbm [thread:$0]  %s31, 128, %s1, [#allocation4]
    $region13: #{tpu_custom_call.1} parent=1 // pred_fallthru
      _
    // Predicated region
    $region14: #{tpu_custom_call.1} parent=1 // pred_check
      _
    $region15: #{tpu_custom_call.1} parent=1 // pred_check_branch
      %35 = sbr.rel (0) target = $region17
    $region16: #{tpu_custom_call.1} parent=1 // pred_region
      %36 = dma.done [#allocation4], 128
    $region17: #{tpu_custom_call.1} parent=1 // pred_fallthru
      _
    %37 = vsyncpa [#allocation3], 1
    %38 = vsyncpa [#allocation4], 1

// kernel: tpu_custom_call.1
$region0: #{tpu_custom_call.1}
  #allocation0 [shape = 'u32[]', space=smem, size = 0x4, offset = 0x4, fixed_abs, tag = 'smem constant byte address 0x4 - core index']
  #allocation1 [shape = 'u32[144,128]{1,0:T(1,128)}', space=vmem, size = 0x12000, scoped, tag = 'internal scratch']
  #allocation2 [shape = 'f32[72,256]{1,0:T(8,128)}', space=vmem, size = 0x12000, scoped, tag = 'scratch operand']
  %s0 = inlined_call_operand.hbm [shape: f32[72,128], index: 0, kind: input, shape index: {}]
  %s1 = inlined_call_operand.hbm [shape: f32[128,256], index: 1, kind: input, shape index: {}]
  %s2 = inlined_call_operand.vmem [shape: f32[1,256], index: 2, kind: input, shape index: {}]
  %s3 = inlined_call_operand.hbm [shape: f32[128,128], index: 3, kind: input, shape index: {}]
  %s4 = inlined_call_operand.vmem [shape: f32[1,128], index: 4, kind: input, shape index: {}]
  %s5 = inlined_call_operand.vmem [shape: f32[1,128], index: 5, kind: input, shape index: {}]
  %s6 = inlined_call_operand.vmem [shape: f32[1,128], index: 6, kind: input, shape index: {}]
  %s7 = inlined_call_operand.vmem [shape: f32[1,128], index: 7, kind: input, shape index: {}]
  %s8 = inlined_call_operand.hbm [shape: f32[72,128], index: 8, kind: output, shape index: {}]
  %s9 = sld [smem:[#allocation0]]
  $region62: #{tpu_custom_call.1} parent=0
    _
  %s11 = ssub.s32 1, %s9
  %s12 = scalar_select 0, %s11, %s9
  $region1: #{tpu_custom_call.1} parent=0
    #allocation3 [shape = 'u8[36864]{0}', space=vmem, size = 0x9000, scoped, tag = 'input window, operand 0, single buffered']
    #allocation4 [shape = 's32[1]{0}', space=sflag, size = 0x4, scoped, tag = 'scoped memory for tpu_custom_call.1']
    #allocation5 [shape = 's32[1]{0}', space=sflag, size = 0x4, scoped, tag = 'scoped memory for tpu_custom_call.1']
    #allocation6 [shape = 'u8[131072]{0}', space=vmem, size = 0x20000, scoped, tag = 'input window, operand 1, single buffered']
    #allocation7 [shape = 's32[1]{0}', space=sflag, size = 0x4, scoped, tag = 'scoped memory for tpu_custom_call.1']
    #allocation8 [shape = 'u8[65536]{0}', space=vmem, size = 0x10000, scoped, tag = 'input window, operand 3, single buffered']
    #allocation9 [shape = 'u8[36864]{0}', space=vmem, size = 0x9000, scoped, tag = 'output window, operand 0, single buffered']
    %13 = vsyncpa [#allocation4], 0
    %14 = vsyncpa [#allocation7], 0
    %15 = vsyncpa [#allocation5], 0
    // Predicated region
    $region2: #{tpu_custom_call.1} parent=1 // pred_check
      _
    $region3: #{tpu_custom_call.1} parent=1 // pred_check_branch
      %17 = sbr.rel (0) target = $region5
    $region4: #{tpu_custom_call.1} parent=1 // pred_region
      %s19 = ssub.s32 1152, 1152
      %20 = vsyncadd [#allocation4], %s19
      %s21 = sshll.u32 [#allocation3], 4
      %s22 = int_to_ptr.vmem [resolvable:$true] %s21
      %27 = dma.hbm_to_vmem [thread:$0]  %s0, 1152, %s22, [#allocation4], 128, 128, 8
    $region5: #{tpu_custom_call.1} parent=1 // pred_fallthru
      _
    // Predicated region
    $region6: #{tpu_custom_call.1} parent=1 // pred_check
      _
    $region7: #{tpu_custom_call.1} parent=1 // pred_check_branch
      %29 = sbr.rel (0) target = $region9
    $region8: #{tpu_custom_call.1} parent=1 // pred_region
      %s31 = ssub.s32 4096, 4096
      %32 = vsyncadd [#allocation7], %s31
      %s33 = sshll.u32 [#allocation6], 4
      %s34 = int_to_ptr.vmem [resolvable:$true] %s33
      %39 = dma.hbm_to_vmem [thread:$0]  %s1, 4096, %s34, [#allocation7], 256, 256, 16
    $region9: #{tpu_custom_call.1} parent=1 // pred_fallthru
      _
    // Predicated region
    $region10: #{tpu_custom_call.1} parent=1 // pred_check
      _
    $region11: #{tpu_custom_call.1} parent=1 // pred_check_branch
      %41 = sbr.rel (0) target = $region13
    $region12: #{tpu_custom_call.1} parent=1 // pred_region
      _
    $region13: #{tpu_custom_call.1} parent=1 // pred_fallthru
      _
    // Predicated region
    $region14: #{tpu_custom_call.1} parent=1 // pred_check
      _
    $region15: #{tpu_custom_call.1} parent=1 // pred_check_branch
      %43 = sbr.rel (0) target = $region17
    $region16: #{tpu_custom_call.1} parent=1 // pred_region
      %s45 = ssub.s32 2048, 2048
      %46 = vsyncadd [#allocation7], %s45
      %s47 = sshll.u32 [#allocation8], 4
      %s48 = int_to_ptr.vmem [resolvable:$true] %s47
      %53 = dma.hbm_to_vmem [thread:$0]  %s3, 2048, %s48, [#allocation7], 128, 128, 8
    $region17: #{tpu_custom_call.1} parent=1 // pred_fallthru
      _
    // Predicated region
    $region18: #{tpu_custom_call.1} parent=1 // pred_check
      _
    $region19: #{tpu_custom_call.1} parent=1 // pred_check_branch
      %55 = sbr.rel (0) target = $region21
    $region20: #{tpu_custom_call.1} parent=1 // pred_region
      _
    $region21: #{tpu_custom_call.1} parent=1 // pred_fallthru
      _
    // Predicated region
    $region22: #{tpu_custom_call.1} parent=1 // pred_check
      _
    $region23: #{tpu_custom_call.1} parent=1 // pred_check_branch
      %57 = sbr.rel (0) target = $region25
    $region24: #{tpu_custom_call.1} parent=1 // pred_region
      _
    $region25: #{tpu_custom_call.1} parent=1 // pred_fallthru
      _
    // Predicated region
    $region26: #{tpu_custom_call.1} parent=1 // pred_check
      _
    $region27: #{tpu_custom_call.1} parent=1 // pred_check_branch
      %59 = sbr.rel (0) target = $region29
    $region28: #{tpu_custom_call.1} parent=1 // pred_region
      _
    $region29: #{tpu_custom_call.1} parent=1 // pred_fallthru
      _
    // Predicated region
    $region30: #{tpu_custom_call.1} parent=1 // pred_check
      _
    $region31: #{tpu_custom_call.1} parent=1 // pred_check_branch
      %61 = sbr.rel (0) target = $region33
    $region32: #{tpu_custom_call.1} parent=1 // pred_region
      _
    $region33: #{tpu_custom_call.1} parent=1 // pred_fallthru
      _
    // Predicated region
    $region34: #{tpu_custom_call.1} parent=1 // pred_check
      _
    $region35: #{tpu_custom_call.1} parent=1 // pred_check_branch
      %63 = sbr.rel (0) target = $region37
    $region36: #{tpu_custom_call.1} parent=1 // pred_region
      %64 = dma.done [#allocation4], 1152
    $region37: #{tpu_custom_call.1} parent=1 // pred_fallthru
      _
    // Predicated region
    $region38: #{tpu_custom_call.1} parent=1 // pred_check
      _
    $region39: #{tpu_custom_call.1} parent=1 // pred_check_branch
      %66 = sbr.rel (0) target = $region41
    $region40: #{tpu_custom_call.1} parent=1 // pred_region
      %67 = dma.done [#allocation7], 4096
    $region41: #{tpu_custom_call.1} parent=1 // pred_fallthru
      _
    // Predicated region
    $region42: #{tpu_custom_call.1} parent=1 // pred_check
      _
    $region43: #{tpu_custom_call.1} parent=1 // pred_check_branch
      %69 = sbr.rel (0) target = $region45
    $region44: #{tpu_custom_call.1} parent=1 // pred_region
      %70 = dma.done [#allocation7], 2048
    $region45: #{tpu_custom_call.1} parent=1 // pred_fallthru
      _
    %p71 = scmp.eq.s32.totalorder 0, 0
    // Predicated region
    $region46: #{tpu_custom_call.1} parent=1 // pred_check
      %p72 = pneg %p71
    $region47: #{tpu_custom_call.1} parent=1 // pred_check_branch
      %74 = sbr.rel (%p72) target = $region49
    $region48: #{tpu_custom_call.1} parent=1 // pred_region
      %75 = vst [vmem:[#allocation2] sm:$0xff] 0.0
      %76 = vst [vmem:[#allocation2 + $0x8] sm:$0xff] 0.0
      %77 = vst [vmem:[#allocation2 + $0x10] sm:$0xff] 0.0
      %78 = vst [vmem:[#allocation2 + $0x18] sm:$0xff] 0.0
      %79 = vst [vmem:[#allocation2 + $0x20] sm:$0xff] 0.0
      %80 = vst [vmem:[#allocation2 + $0x28] sm:$0xff] 0.0
      %81 = vst [vmem:[#allocation2 + $0x30] sm:$0xff] 0.0
      %82 = vst [vmem:[#allocation2 + $0x38] sm:$0xff] 0.0
      %83 = vst [vmem:[#allocation2 + $0x40] sm:$0xff] 0.0
      %84 = vst [vmem:[#allocation2 + $0x48] sm:$0xff] 0.0
      %85 = vst [vmem:[#allocation2 + $0x50] sm:$0xff] 0.0
      %86 = vst [vmem:[#allocation2 + $0x58] sm:$0xff] 0.0
      %87 = vst [vmem:[#allocation2 + $0x60] sm:$0xff] 0.0
      %88 = vst [vmem:[#allocation2 + $0x68] sm:$0xff] 0.0
      %89 = vst [vmem:[#allocation2 + $0x70] sm:$0xff] 0.0
      %90 = vst [vmem:[#allocation2 + $0x78] sm:$0xff] 0.0
      %91 = vst [vmem:[#allocation2 + $0x80] sm:$0xff] 0.0
      %92 = vst [vmem:[#allocation2 + $0x88] sm:$0xff] 0.0
    $region49: #{tpu_custom_call.1} parent=1 // pred_fallthru
      _
    %v93 = vld [vmem:[#allocation2] sm:$0xff]
    %v94 = vld [vmem:[#allocation2 + $0x8] sm:$0xff]
    %v95 = vld [vmem:[#allocation2 + $0x10] sm:$0xff]
    %v96 = vld [vmem:[#allocation2 + $0x18] sm:$0xff]
    %v97 = vld [vmem:[#allocation2 + $0x20] sm:$0xff]
    %v98 = vld [vmem:[#allocation2 + $0x28] sm:$0xff]
    %v99 = vld [vmem:[#allocation2 + $0x30] sm:$0xff]
    %v100 = vld [vmem:[#allocation2 + $0x38] sm:$0xff]
    %v101 = vld [vmem:[#allocation2 + $0x40] sm:$0xff]
    %v102 = vld [vmem:[#allocation2 + $0x48] sm:$0xff]
    %v103 = vld [vmem:[#allocation2 + $0x50] sm:$0xff]
    %v104 = vld [vmem:[#allocation2 + $0x58] sm:$0xff]
    %v105 = vld [vmem:[#allocation2 + $0x60] sm:$0xff]
    %v106 = vld [vmem:[#allocation2 + $0x68] sm:$0xff]
    %v107 = vld [vmem:[#allocation2 + $0x70] sm:$0xff]
    %v108 = vld [vmem:[#allocation2 + $0x78] sm:$0xff]
    %v109 = vld [vmem:[#allocation2 + $0x80] sm:$0xff]
    %v110 = vld [vmem:[#allocation2 + $0x88] sm:$0xff]
    %v111 = vld [vmem:[#allocation3] sm:$0xff]
    %v112 = vld [vmem:[#allocation3 + $0x8] sm:$0xff]
    %v113 = vld [vmem:[#allocation3 + $0x10] sm:$0xff]
    %v114 = vld [vmem:[#allocation3 + $0x18] sm:$0xff]
    %v115 = vld [vmem:[#allocation3 + $0x20] sm:$0xff]
    %v116 = vld [vmem:[#allocation3 + $0x28] sm:$0xff]
    %v117 = vld [vmem:[#allocation3 + $0x30] sm:$0xff]
    %v118 = vld [vmem:[#allocation3 + $0x38] sm:$0xff]
    %v119 = vld [vmem:[#allocation3 + $0x40] sm:$0xff]
    %v120 = vld [vmem:[#allocation6] sm:$0xff]
    %v121 = vld [vmem:[#allocation6 + $0x8] sm:$0xff]
    %v122 = vld [vmem:[#allocation6 + $0x10] sm:$0xff]
    %v123 = vld [vmem:[#allocation6 + $0x18] sm:$0xff]
    %v124 = vld [vmem:[#allocation6 + $0x20] sm:$0xff]
    %v125 = vld [vmem:[#allocation6 + $0x28] sm:$0xff]
    %v126 = vld [vmem:[#allocation6 + $0x30] sm:$0xff]
    %v127 = vld [vmem:[#allocation6 + $0x38] sm:$0xff]
    %v128 = vld [vmem:[#allocation6 + $0x40] sm:$0xff]
    %v129 = vld [vmem:[#allocation6 + $0x48] sm:$0xff]
    %v130 = vld [vmem:[#allocation6 + $0x50] sm:$0xff]
    %v131 = vld [vmem:[#allocation6 + $0x58] sm:$0xff]
    %v132 = vld [vmem:[#allocation6 + $0x60] sm:$0xff]
    %v133 = vld [vmem:[#allocation6 + $0x68] sm:$0xff]
    %v134 = vld [vmem:[#allocation6 + $0x70] sm:$0xff]
    %v135 = vld [vmem:[#allocation6 + $0x78] sm:$0xff]
    %v136 = vld [vmem:[#allocation6 + $0x80] sm:$0xff]
    %v137 = vld [vmem:[#allocation6 + $0x88] sm:$0xff]
    %v138 = vld [vmem:[#allocation6 + $0x90] sm:$0xff]
    %v139 = vld [vmem:[#allocation6 + $0x98] sm:$0xff]
    %v140 = vld [vmem:[#allocation6 + $0xa0] sm:$0xff]
    %v141 = vld [vmem:[#allocation6 + $0xa8] sm:$0xff]
    %v142 = vld [vmem:[#allocation6 + $0xb0] sm:$0xff]
    %v143 = vld [vmem:[#allocation6 + $0xb8] sm:$0xff]
    %v144 = vld [vmem:[#allocation6 + $0xc0] sm:$0xff]
    %v145 = vld [vmem:[#allocation6 + $0xc8] sm:$0xff]
    %v146 = vld [vmem:[#allocation6 + $0xd0] sm:$0xff]
    %v147 = vld [vmem:[#allocation6 + $0xd8] sm:$0xff]
    %v148 = vld [vmem:[#allocation6 + $0xe0] sm:$0xff]
    %v149 = vld [vmem:[#allocation6 + $0xe8] sm:$0xff]
    %v150 = vld [vmem:[#allocation6 + $0xf0] sm:$0xff]
    %v151 = vld [vmem:[#allocation6 + $0xf8] sm:$0xff]
    %152 = vmatprep.subr.mxu0 %v151
    %153 = vmatpush1.msra.mxu0 %v150
    %154 = vmatprep.subr.mxu0 %v149
    %155 = vmatpush1.msra.mxu0 %v148
    %156 = vmatprep.subr.mxu0 %v147
    %157 = vmatpush1.msra.mxu0 %v146
    %158 = vmatprep.subr.mxu0 %v145
    %159 = vmatpush1.msra.mxu0 %v144
    %160 = vmatprep.subr.mxu0 %v143
    %161 = vmatpush1.msra.mxu0 %v142
    %162 = vmatprep.subr.mxu0 %v141
    %163 = vmatpush1.msra.mxu0 %v140
    %164 = vmatprep.subr.mxu0 %v139
    %165 = vmatpush1.msra.mxu0 %v138
    %166 = vmatprep.subr.mxu0 %v137
    %167 = vmatpush1.msra.mxu0 %v136
    %168 = vmatprep.subr.mxu0 %v135
    %169 = vmatpush1.msra.mxu0 %v134
    %170 = vmatprep.subr.mxu0 %v133
    %171 = vmatpush1.msra.mxu0 %v132
    %172 = vmatprep.subr.mxu0 %v131
    %173 = vmatpush1.msra.mxu0 %v130
    %174 = vmatprep.subr.mxu0 %v129
    %175 = vmatpush1.msra.mxu0 %v128
    %176 = vmatprep.subr.mxu0 %v127
    %177 = vmatpush1.msra.mxu0 %v126
    %178 = vmatprep.subr.mxu0 %v125
    %179 = vmatpush1.msra.mxu0 %v124
    %180 = vmatprep.subr.mxu0 %v123
    %181 = vmatpush1.msra.mxu0 %v122
    %182 = vmatprep.subr.mxu0 %v121
    %183 = vmatpush1.msra.mxu0 %v120
    %184 = vmatprep.subr.mxu0 0.0
    %185 = vmatpush2.msra.mxu0 0.0
    %186 = vmatprep.subr.mxu0 0.0
    %187 = vmatpush2.msra.mxu0 0.0
    %188 = vmatprep.subr.mxu0 0.0
    %189 = vmatpush2.msra.mxu0 0.0
    %190 = vmatprep.subr.mxu0 0.0
    %191 = vmatpush2.msra.mxu0 0.0
    %192 = vmatprep.subr.mxu0 0.0
    %193 = vmatpush2.msra.mxu0 0.0
    %194 = vmatprep.subr.mxu0 0.0
    %195 = vmatpush2.msra.mxu0 0.0
    %196 = vmatprep.subr.mxu0 0.0
    %197 = vmatpush2.msra.mxu0 0.0
    %198 = vmatprep.subr.mxu0 0.0
    %199 = vmatpush2.msra.mxu0 0.0
    %200 = vmatprep.subr.mxu0 0.0
    %201 = vmatpush2.msra.mxu0 0.0
    %202 = vmatprep.subr.mxu0 0.0
    %203 = vmatpush2.msra.mxu0 0.0
    %204 = vmatprep.subr.mxu0 0.0
    %205 = vmatpush2.msra.mxu0 0.0
    %206 = vmatprep.subr.mxu0 0.0
    %207 = vmatpush2.msra.mxu0 0.0
    %208 = vmatprep.subr.mxu0 0.0
    %209 = vmatpush2.msra.mxu0 0.0
    %210 = vmatprep.subr.mxu0 0.0
    %211 = vmatpush2.msra.mxu0 0.0
    %212 = vmatprep.subr.mxu0 0.0
    %213 = vmatpush2.msra.mxu0 0.0
    %214 = vmatprep.subr.mxu0 0.0
    %215 = vmatpush2.msra.mxu0 0.0
    %216 = vmatprep.mubr.f32.mxu0 0.0
    %217 = vmatmul.mubr.f32.gmra.mxu0 %v111
    %v218 = vpop.f32.mrf.mxu0
    %v219 = vadd.f32 0.0, %v218
    %v220 = vpop.f32.mrf.mxu0
    %v221 = vadd.f32 0.0, %v220
    %222 = vmatprep.mubr.f32.mxu0 0.0
    %223 = vmatmul.mubr.f32.gmra.mxu0 %v112
    %v224 = vpop.f32.mrf.mxu0
    %v225 = vadd.f32 0.0, %v224
    %v226 = vpop.f32.mrf.mxu0
    %v227 = vadd.f32 0.0, %v226
    %228 = vmatprep.mubr.f32.mxu0 0.0
    %229 = vmatmul.mubr.f32.gmra.mxu0 %v113
    %v230 = vpop.f32.mrf.mxu0
    %v231 = vadd.f32 0.0, %v230
    %v232 = vpop.f32.mrf.mxu0
    %v233 = vadd.f32 0.0, %v232
    %234 = vmatprep.mubr.f32.mxu0 0.0
    %235 = vmatmul.mubr.f32.gmra.mxu0 %v114
    %v236 = vpop.f32.mrf.mxu0
    %v237 = vadd.f32 0.0, %v236
    %v238 = vpop.f32.mrf.mxu0
    %v239 = vadd.f32 0.0, %v238
    %240 = vmatprep.mubr.f32.mxu0 0.0
    %241 = vmatmul.mubr.f32.gmra.mxu0 %v115
    %v242 = vpop.f32.mrf.mxu0
    %v243 = vadd.f32 0.0, %v242
    %v244 = vpop.f32.mrf.mxu0
    %v245 = vadd.f32 0.0, %v244
    %246 = vmatprep.mubr.f32.mxu0 0.0
    %247 = vmatmul.mubr.f32.gmra.mxu0 %v116
    %v248 = vpop.f32.mrf.mxu0
    %v249 = vadd.f32 0.0, %v248
    %v250 = vpop.f32.mrf.mxu0
    %v251 = vadd.f32 0.0, %v250
    %252 = vmatprep.mubr.f32.mxu0 0.0
    %253 = vmatmul.mubr.f32.gmra.mxu0 %v117
    %v254 = vpop.f32.mrf.mxu0
    %v255 = vadd.f32 0.0, %v254
    %v256 = vpop.f32.mrf.mxu0
    %v257 = vadd.f32 0.0, %v256
    %258 = vmatprep.mubr.f32.mxu0 0.0
    %259 = vmatmul.mubr.f32.gmra.mxu0 %v118
    %v260 = vpop.f32.mrf.mxu0
    %v261 = vadd.f32 0.0, %v260
    %v262 = vpop.f32.mrf.mxu0
    %v263 = vadd.f32 0.0, %v262
    %264 = vmatprep.mubr.f32.mxu0 0.0
    %265 = vmatmul.mubr.f32.gmra.mxu0 %v119
    %v266 = vpop.f32.mrf.mxu0
    %v267 = vadd.f32 0.0, %v266
    %v268 = vpop.f32.mrf.mxu0
    %v269 = vadd.f32 0.0, %v268
    %270 = vdwg.mxu0
    %v271 = vadd.f32 %v93, %v219
    %v272 = vadd.f32 %v94, %v221
    %v273 = vadd.f32 %v95, %v225
    %v274 = vadd.f32 %v96, %v227
    %v275 = vadd.f32 %v97, %v231
    %v276 = vadd.f32 %v98, %v233
    %v277 = vadd.f32 %v99, %v237
    %v278 = vadd.f32 %v100, %v239
    %v279 = vadd.f32 %v101, %v243
    %v280 = vadd.f32 %v102, %v245
    %v281 = vadd.f32 %v103, %v249
    %v282 = vadd.f32 %v104, %v251
    %v283 = vadd.f32 %v105, %v255
    %v284 = vadd.f32 %v106, %v257
    %v285 = vadd.f32 %v107, %v261
    %v286 = vadd.f32 %v108, %v263
    %v287 = vadd.f32 %v109, %v267
    %v288 = vadd.f32 %v110, %v269
    %289 = vst [vmem:[#allocation2] sm:$0xff] %v271
    %290 = vst [vmem:[#allocation2 + $0x8] sm:$0xff] %v272
    %291 = vst [vmem:[#allocation2 + $0x10] sm:$0xff] %v273
    %292 = vst [vmem:[#allocation2 + $0x18] sm:$0xff] %v274
    %293 = vst [vmem:[#allocation2 + $0x20] sm:$0xff] %v275
    %294 = vst [vmem:[#allocation2 + $0x28] sm:$0xff] %v276
    %295 = vst [vmem:[#allocation2 + $0x30] sm:$0xff] %v277
    %296 = vst [vmem:[#allocation2 + $0x38] sm:$0xff] %v278
    %297 = vst [vmem:[#allocation2 + $0x40] sm:$0xff] %v279
    %298 = vst [vmem:[#allocation2 + $0x48] sm:$0xff] %v280
    %299 = vst [vmem:[#allocation2 + $0x50] sm:$0xff] %v281
    %300 = vst [vmem:[#allocation2 + $0x58] sm:$0xff] %v282
    %301 = vst [vmem:[#allocation2 + $0x60] sm:$0xff] %v283
    %302 = vst [vmem:[#allocation2 + $0x68] sm:$0xff] %v284
    %303 = vst [vmem:[#allocation2 + $0x70] sm:$0xff] %v285
    %304 = vst [vmem:[#allocation2 + $0x78] sm:$0xff] %v286
    %305 = vst [vmem:[#allocation2 + $0x80] sm:$0xff] %v287
    %306 = vst [vmem:[#allocation2 + $0x88] sm:$0xff] %v288
    // Predicated region
    $region50: #{tpu_custom_call.1} parent=1 // pred_check
      %p307 = pneg %p71
    $region51: #{tpu_custom_call.1} parent=1 // pred_check_branch
      %309 = sbr.rel (%p307) target = $region53
    $region52: #{tpu_custom_call.1} parent=1 // pred_region
      %v310 = vld [vmem:[#allocation2] sm:$0xff]
      %v311 = vld [vmem:[#allocation2 + $0x8] sm:$0xff]
      %v312 = vld [vmem:[#allocation2 + $0x10] sm:$0xff]
      %v313 = vld [vmem:[#allocation2 + $0x18] sm:$0xff]
      %v314 = vld [vmem:[#allocation2 + $0x20] sm:$0xff]
      %v315 = vld [vmem:[#allocation2 + $0x28] sm:$0xff]
      %v316 = vld [vmem:[#allocation2 + $0x30] sm:$0xff]
      %v317 = vld [vmem:[#allocation2 + $0x38] sm:$0xff]
      %v318 = vld [vmem:[#allocation2 + $0x40] sm:$0xff]
      %v319 = vld [vmem:[#allocation2 + $0x48] sm:$0xff]
      %v320 = vld [vmem:[#allocation2 + $0x50] sm:$0xff]
      %v321 = vld [vmem:[#allocation2 + $0x58] sm:$0xff]
      %v322 = vld [vmem:[#allocation2 + $0x60] sm:$0xff]
      %v323 = vld [vmem:[#allocation2 + $0x68] sm:$0xff]
      %v324 = vld [vmem:[#allocation2 + $0x70] sm:$0xff]
      %v325 = vld [vmem:[#allocation2 + $0x78] sm:$0xff]
      %v326 = vld [vmem:[#allocation2 + $0x80] sm:$0xff]
      %v327 = vld [vmem:[#allocation2 + $0x88] sm:$0xff]
      %v328 = vld [vmem:[%s2] sm:$0x3]
      %v330 = vlaneseq
      %v331 = vshrl.u32 %v330, 7
      %v332 = vsub.s32 0, %v331
      %v333 = vrot.slane %v328, %v332
      %v334 = vlaneseq
      %v335 = vshrl.u32 %v334, 7
      %v336 = vsub.s32 1, %v335
      %v337 = vrot.slane %v328, %v336
      %v340 = vadd.f32 %v310, %v333
      %v341 = vadd.f32 %v311, %v337
      %v342 = vadd.f32 %v312, %v333
      %v343 = vadd.f32 %v313, %v337
      %v344 = vadd.f32 %v314, %v333
      %v345 = vadd.f32 %v315, %v337
      %v346 = vadd.f32 %v316, %v333
      %v347 = vadd.f32 %v317, %v337
      %v348 = vadd.f32 %v318, %v333
      %v349 = vadd.f32 %v319, %v337
      %v350 = vadd.f32 %v320, %v333
      %v351 = vadd.f32 %v321, %v337
      %v352 = vadd.f32 %v322, %v333
      %v353 = vadd.f32 %v323, %v337
      %v354 = vadd.f32 %v324, %v333
      %v355 = vadd.f32 %v325, %v337
      %v356 = vadd.f32 %v326, %v333
      %v357 = vadd.f32 %v327, %v337
      %v358 = vmax.f32 %v340, 0.0
      %v359 = vmax.f32 %v342, 0.0
      %v360 = vmax.f32 %v344, 0.0
      %v361 = vmax.f32 %v346, 0.0
      %v362 = vmax.f32 %v348, 0.0
      %v363 = vmax.f32 %v350, 0.0
      %v364 = vmax.f32 %v352, 0.0
      %v365 = vmax.f32 %v354, 0.0
      %v366 = vmax.f32 %v356, 0.0
      %v367 = vld [vmem:[#allocation8] sm:$0xff]
      %v368 = vld [vmem:[#allocation8 + $0x8] sm:$0xff]
      %v369 = vld [vmem:[#allocation8 + $0x10] sm:$0xff]
      %v370 = vld [vmem:[#allocation8 + $0x18] sm:$0xff]
      %v371 = vld [vmem:[#allocation8 + $0x20] sm:$0xff]
      %v372 = vld [vmem:[#allocation8 + $0x28] sm:$0xff]
      %v373 = vld [vmem:[#allocation8 + $0x30] sm:$0xff]
      %v374 = vld [vmem:[#allocation8 + $0x38] sm:$0xff]
      %v375 = vld [vmem:[#allocation8 + $0x40] sm:$0xff]
      %v376 = vld [vmem:[#allocation8 + $0x48] sm:$0xff]
      %v377 = vld [vmem:[#allocation8 + $0x50] sm:$0xff]
      %v378 = vld [vmem:[#allocation8 + $0x58] sm:$0xff]
      %v379 = vld [vmem:[#allocation8 + $0x60] sm:$0xff]
      %v380 = vld [vmem:[#allocation8 + $0x68] sm:$0xff]
      %v381 = vld [vmem:[#allocation8 + $0x70] sm:$0xff]
      %v382 = vld [vmem:[#allocation8 + $0x78] sm:$0xff]
      %v383 = vld [vmem:[%s4] sm:$0x1]
      %v385 = vlaneseq
      %v386 = vshrl.u32 %v385, 7
      %v387 = vsub.s32 0, %v386
      %v388 = vrot.slane %v383, %v387
      %390 = vmatprep.subr.mxu0 0.0
      %391 = vmatpush1.msra.mxu0 %v382
      %392 = vmatprep.subr.mxu0 0.0
      %393 = vmatpush1.msra.mxu0 %v381
      %394 = vmatprep.subr.mxu0 0.0
      %395 = vmatpush1.msra.mxu0 %v380
      %396 = vmatprep.subr.mxu0 0.0
      %397 = vmatpush1.msra.mxu0 %v379
      %398 = vmatprep.subr.mxu0 0.0
      %399 = vmatpush1.msra.mxu0 %v378
      %400 = vmatprep.subr.mxu0 0.0
      %401 = vmatpush1.msra.mxu0 %v377
      %402 = vmatprep.subr.mxu0 0.0
      %403 = vmatpush1.msra.mxu0 %v376
      %404 = vmatprep.subr.mxu0 0.0
      %405 = vmatpush1.msra.mxu0 %v375
      %406 = vmatprep.subr.mxu0 0.0
      %407 = vmatpush1.msra.mxu0 %v374
      %408 = vmatprep.subr.mxu0 0.0
      %409 = vmatpush1.msra.mxu0 %v373
      %410 = vmatprep.subr.mxu0 0.0
      %411 = vmatpush1.msra.mxu0 %v372
      %412 = vmatprep.subr.mxu0 0.0
      %413 = vmatpush1.msra.mxu0 %v371
      %414 = vmatprep.subr.mxu0 0.0
      %415 = vmatpush1.msra.mxu0 %v370
      %416 = vmatprep.subr.mxu0 0.0
      %417 = vmatpush1.msra.mxu0 %v369
      %418 = vmatprep.subr.mxu0 0.0
      %419 = vmatpush1.msra.mxu0 %v368
      %420 = vmatprep.subr.mxu0 0.0
      %421 = vmatpush1.msra.mxu0 %v367
      %422 = vmatprep.subr.mxu0 0.0
      %423 = vmatpush2.msra.mxu0 0.0
      %424 = vmatprep.subr.mxu0 0.0
      %425 = vmatpush2.msra.mxu0 0.0
      %426 = vmatprep.subr.mxu0 0.0
      %427 = vmatpush2.msra.mxu0 0.0
      %428 = vmatprep.subr.mxu0 0.0
      %429 = vmatpush2.msra.mxu0 0.0
      %430 = vmatprep.subr.mxu0 0.0
      %431 = vmatpush2.msra.mxu0 0.0
      %432 = vmatprep.subr.mxu0 0.0
      %433 = vmatpush2.msra.mxu0 0.0
      %434 = vmatprep.subr.mxu0 0.0
      %435 = vmatpush2.msra.mxu0 0.0
      %436 = vmatprep.subr.mxu0 0.0
      %437 = vmatpush2.msra.mxu0 0.0
      %438 = vmatprep.subr.mxu0 0.0
      %439 = vmatpush2.msra.mxu0 0.0
      %440 = vmatprep.subr.mxu0 0.0
      %441 = vmatpush2.msra.mxu0 0.0
      %442 = vmatprep.subr.mxu0 0.0
      %443 = vmatpush2.msra.mxu0 0.0
      %444 = vmatprep.subr.mxu0 0.0
      %445 = vmatpush2.msra.mxu0 0.0
      %446 = vmatprep.subr.mxu0 0.0
      %447 = vmatpush2.msra.mxu0 0.0
      %448 = vmatprep.subr.mxu0 0.0
      %449 = vmatpush2.msra.mxu0 0.0
      %450 = vmatprep.subr.mxu0 0.0
      %451 = vmatpush2.msra.mxu0 0.0
      %452 = vmatprep.subr.mxu0 0.0
      %453 = vmatpush2.msra.mxu0 0.0
      %454 = vmatprep.mubr.f32.mxu0 0.0
      %455 = vmatmul.mubr.f32.gmra.mxu0 %v358
      %v456 = vpop.f32.mrf.mxu0
      %v457 = vadd.f32 %v388, %v456
      %v458 = vpop.f32.mrf.mxu0
      %459 = vmatprep.mubr.f32.mxu0 0.0
      %460 = vmatmul.mubr.f32.gmra.mxu0 %v359
      %v461 = vpop.f32.mrf.mxu0
      %v462 = vadd.f32 %v388, %v461
      %v463 = vpop.f32.mrf.mxu0
      %464 = vmatprep.mubr.f32.mxu0 0.0
      %465 = vmatmul.mubr.f32.gmra.mxu0 %v360
      %v466 = vpop.f32.mrf.mxu0
      %v467 = vadd.f32 %v388, %v466
      %v468 = vpop.f32.mrf.mxu0
      %469 = vmatprep.mubr.f32.mxu0 0.0
      %470 = vmatmul.mubr.f32.gmra.mxu0 %v361
      %v471 = vpop.f32.mrf.mxu0
      %v472 = vadd.f32 %v388, %v471
      %v473 = vpop.f32.mrf.mxu0
      %474 = vmatprep.mubr.f32.mxu0 0.0
      %475 = vmatmul.mubr.f32.gmra.mxu0 %v362
      %v476 = vpop.f32.mrf.mxu0
      %v477 = vadd.f32 %v388, %v476
      %v478 = vpop.f32.mrf.mxu0
      %479 = vmatprep.mubr.f32.mxu0 0.0
      %480 = vmatmul.mubr.f32.gmra.mxu0 %v363
      %v481 = vpop.f32.mrf.mxu0
      %v482 = vadd.f32 %v388, %v481
      %v483 = vpop.f32.mrf.mxu0
      %484 = vmatprep.mubr.f32.mxu0 0.0
      %485 = vmatmul.mubr.f32.gmra.mxu0 %v364
      %v486 = vpop.f32.mrf.mxu0
      %v487 = vadd.f32 %v388, %v486
      %v488 = vpop.f32.mrf.mxu0
      %489 = vmatprep.mubr.f32.mxu0 0.0
      %490 = vmatmul.mubr.f32.gmra.mxu0 %v365
      %v491 = vpop.f32.mrf.mxu0
      %v492 = vadd.f32 %v388, %v491
      %v493 = vpop.f32.mrf.mxu0
      %494 = vmatprep.mubr.f32.mxu0 0.0
      %495 = vmatmul.mubr.f32.gmra.mxu0 %v366
      %v496 = vpop.f32.mrf.mxu0
      %v497 = vadd.f32 %v388, %v496
      %v498 = vpop.f32.mrf.mxu0
      %499 = vdwg.mxu0
      %v500 = vadd.f32 %v457, %v341
      %v501 = vadd.f32 %v462, %v343
      %v502 = vadd.f32 %v467, %v345
      %v503 = vadd.f32 %v472, %v347
      %v504 = vadd.f32 %v477, %v349
      %v505 = vadd.f32 %v482, %v351
      %v506 = vadd.f32 %v487, %v353
      %v507 = vadd.f32 %v492, %v355
      %v508 = vadd.f32 %v497, %v357
      %509 = vadd.xlane.f32.xlu0 %v500
      %v510 = vpop.xlane.xlu0 %509
      %511 = vadd.xlane.f32.xlu0 %v501
      %v512 = vpop.xlane.xlu0 %511
      %513 = vadd.xlane.f32.xlu0 %v502
      %v514 = vpop.xlane.xlu0 %513
      %515 = vadd.xlane.f32.xlu0 %v503
      %v516 = vpop.xlane.xlu0 %515
      %517 = vadd.xlane.f32.xlu0 %v504
      %v518 = vpop.xlane.xlu0 %517
      %519 = vadd.xlane.f32.xlu0 %v505
      %v520 = vpop.xlane.xlu0 %519
      %521 = vadd.xlane.f32.xlu0 %v506
      %v522 = vpop.xlane.xlu0 %521
      %523 = vadd.xlane.f32.xlu0 %v507
      %v524 = vpop.xlane.xlu0 %523
      %525 = vadd.xlane.f32.xlu0 %v508
      %v526 = vpop.xlane.xlu0 %525
      %v527 = vmul.f32 %v510, 0.25
      %v528 = vmul.f32 %v512, 0.25
      %v529 = vmul.f32 %v514, 0.25
      %v530 = vmul.f32 %v516, 0.25
      %v531 = vmul.f32 %v518, 0.25
      %v532 = vmul.f32 %v520, 0.25
      %v533 = vmul.f32 %v522, 0.25
      %v534 = vmul.f32 %v524, 0.25
      %v535 = vmul.f32 %v526, 0.25
      %v536 = vsub.f32 %v500, %v527
      %v537 = vsub.f32 %v501, %v528
      %v538 = vsub.f32 %v502, %v529
      %v539 = vsub.f32 %v503, %v530
      %v540 = vsub.f32 %v504, %v531
      %v541 = vsub.f32 %v505, %v532
      %v542 = vsub.f32 %v506, %v533
      %v543 = vsub.f32 %v507, %v534
      %v544 = vsub.f32 %v508, %v535
      %v545 = vmul.f32 %v536, %v536
      %v546 = vmul.f32 %v537, %v537
      %v547 = vmul.f32 %v538, %v538
      %v548 = vmul.f32 %v539, %v539
      %v549 = vmul.f32 %v540, %v540
      %v550 = vmul.f32 %v541, %v541
      %v551 = vmul.f32 %v542, %v542
      %v552 = vmul.f32 %v543, %v543
      %v553 = vmul.f32 %v544, %v544
      %v554 = vld [vmem:[%s7] sm:$0x1]
      %v556 = vlaneseq
      %v557 = vshrl.u32 %v556, 7
      %v558 = vsub.s32 0, %v557
      %v559 = vrot.slane %v554, %v558
      %v561 = vmul.f32 %v545, %v559
      %v562 = vmul.f32 %v546, %v559
      %v563 = vmul.f32 %v547, %v559
      %v564 = vmul.f32 %v548, %v559
      %v565 = vmul.f32 %v549, %v559
      %v566 = vmul.f32 %v550, %v559
      %v567 = vmul.f32 %v551, %v559
      %v568 = vmul.f32 %v552, %v559
      %v569 = vmul.f32 %v553, %v559
      %570 = vadd.xlane.f32.xlu0 %v561
      %v571 = vpop.xlane.xlu0 %570
      %572 = vadd.xlane.f32.xlu0 %v562
      %v573 = vpop.xlane.xlu0 %572
      %574 = vadd.xlane.f32.xlu0 %v563
      %v575 = vpop.xlane.xlu0 %574
      %576 = vadd.xlane.f32.xlu0 %v564
      %v577 = vpop.xlane.xlu0 %576
      %578 = vadd.xlane.f32.xlu0 %v565
      %v579 = vpop.xlane.xlu0 %578
      %580 = vadd.xlane.f32.xlu0 %v566
      %v581 = vpop.xlane.xlu0 %580
      %582 = vadd.xlane.f32.xlu0 %v567
      %v583 = vpop.xlane.xlu0 %582
      %584 = vadd.xlane.f32.xlu0 %v568
      %v585 = vpop.xlane.xlu0 %584
      %586 = vadd.xlane.f32.xlu0 %v569
      %v587 = vpop.xlane.xlu0 %586
      %v588 = vmul.f32 %v571, 0.25
      %v589 = vmul.f32 %v573, 0.25
      %v590 = vmul.f32 %v575, 0.25
      %v591 = vmul.f32 %v577, 0.25
      %v592 = vmul.f32 %v579, 0.25
      %v593 = vmul.f32 %v581, 0.25
      %v594 = vmul.f32 %v583, 0.25
      %v595 = vmul.f32 %v585, 0.25
      %v596 = vmul.f32 %v587, 0.25
      %v597 = vadd.f32 %v588, 1e-05
      %v598 = vadd.f32 %v589, 1e-05
      %v599 = vadd.f32 %v590, 1e-05
      %v600 = vadd.f32 %v591, 1e-05
      %v601 = vadd.f32 %v592, 1e-05
      %v602 = vadd.f32 %v593, 1e-05
      %v603 = vadd.f32 %v594, 1e-05
      %v604 = vadd.f32 %v595, 1e-05
      %v605 = vadd.f32 %v596, 1e-05
      %v606 = vrsqrt.pop %v597
      %v607 = vrsqrt.pop %v598
      %v608 = vrsqrt.pop %v599
      %v609 = vrsqrt.pop %v600
      %v610 = vrsqrt.pop %v601
      %v611 = vrsqrt.pop %v602
      %v612 = vrsqrt.pop %v603
      %v613 = vrsqrt.pop %v604
      %v614 = vrsqrt.pop %v605
      %v615 = vmul.f32 %v536, %v606
      %v616 = vmul.f32 %v537, %v607
      %v617 = vmul.f32 %v538, %v608
      %v618 = vmul.f32 %v539, %v609
      %v619 = vmul.f32 %v540, %v610
      %v620 = vmul.f32 %v541, %v611
      %v621 = vmul.f32 %v542, %v612
      %v622 = vmul.f32 %v543, %v613
      %v623 = vmul.f32 %v544, %v614
      %v624 = vld [vmem:[%s5] sm:$0x1]
      %v626 = vlaneseq
      %v627 = vshrl.u32 %v626, 7
      %v628 = vsub.s32 0, %v627
      %v629 = vrot.slane %v624, %v628
      %v631 = vmul.f32 %v615, %v629
      %v632 = vmul.f32 %v616, %v629
      %v633 = vmul.f32 %v617, %v629
      %v634 = vmul.f32 %v618, %v629
      %v635 = vmul.f32 %v619, %v629
      %v636 = vmul.f32 %v620, %v629
      %v637 = vmul.f32 %v621, %v629
      %v638 = vmul.f32 %v622, %v629
      %v639 = vmul.f32 %v623, %v629
      %v640 = vld [vmem:[%s6] sm:$0x1]
      %v642 = vlaneseq
      %v643 = vshrl.u32 %v642, 7
      %v644 = vsub.s32 0, %v643
      %v645 = vrot.slane %v640, %v644
      %v647 = vadd.f32 %v631, %v645
      %v648 = vadd.f32 %v632, %v645
      %v649 = vadd.f32 %v633, %v645
      %v650 = vadd.f32 %v634, %v645
      %v651 = vadd.f32 %v635, %v645
      %v652 = vadd.f32 %v636, %v645
      %v653 = vadd.f32 %v637, %v645
      %v654 = vadd.f32 %v638, %v645
      %v655 = vadd.f32 %v639, %v645
      %656 = vst [vmem:[#allocation9] sm:$0xff] %v647
      %657 = vst [vmem:[#allocation9 + $0x8] sm:$0xff] %v648
      %658 = vst [vmem:[#allocation9 + $0x10] sm:$0xff] %v649
      %659 = vst [vmem:[#allocation9 + $0x18] sm:$0xff] %v650
      %660 = vst [vmem:[#allocation9 + $0x20] sm:$0xff] %v651
      %661 = vst [vmem:[#allocation9 + $0x28] sm:$0xff] %v652
      %662 = vst [vmem:[#allocation9 + $0x30] sm:$0xff] %v653
      %663 = vst [vmem:[#allocation9 + $0x38] sm:$0xff] %v654
      %664 = vst [vmem:[#allocation9 + $0x40] sm:$0xff] %v655
    $region53: #{tpu_custom_call.1} parent=1 // pred_fallthru
      _
    // Predicated region
    $region54: #{tpu_custom_call.1} parent=1 // pred_check
      _
    $region55: #{tpu_custom_call.1} parent=1 // pred_check_branch
      %666 = sbr.rel (0) target = $region57
    $region56: #{tpu_custom_call.1} parent=1 // pred_region
      %s668 = ssub.s32 1152, 1152
      %669 = vsyncadd [#allocation5], %s668
      %s670 = sshll.u32 [#allocation9], 4
      %s671 = int_to_ptr.vmem [resolvable:$true] %s670
      %676 = dma.vmem_to_hbm [thread:$0]  %s671, 1152, %s8, [#allocation5], 128, 128, 8
    $region57: #{tpu_custom_call.1} parent=1 // pred_fallthru
      _
    // Predicated region
    $region58: #{tpu_custom_call.1} parent=1 // pred_check
      _
    $region59: #{tpu_custom_call.1} parent=1 // pred_check_branch
      %678 = sbr.rel (0) target = $region61
    $region60: #{tpu_custom_call.1} parent=1 // pred_region
      %679 = dma.done [#allocation5], 1152
    $region61: #{tpu_custom_call.1} parent=1 // pred_fallthru
      _
    %680 = vsyncpa [#allocation4], 1
    %681 = vsyncpa [#allocation7], 1
    %682 = vsyncpa [#allocation5], 1

</llo_original>
